<compile_context>
chip_gen: v6e
topology: v6e:2x2x1
jax: 0.10.0
libtpu: 0.0.40
codegen_flags: <defaults>
</compile_context>

<pallas_src>
import jax
import jax.numpy as jnp
from jax.experimental import pallas as pl
from jax.experimental.pallas import tpu as pltpu


def _linear_sigmoid_kernel(x_ref, w_ref, b_ref, o_ref):
    x = x_ref[...]                        # (TB, 12)
    w = w_ref[...]                        # (12, 4)  -- VMEM-resident across all grid steps
    b = b_ref[...]                        # (1, 4)   -- VMEM-resident across all grid steps
    # Memory-bound op: MXU is ~99% padding here but not the bottleneck; dot is simplest.
    z = jnp.dot(x, w, preferred_element_type=jnp.float32) + b
    # sigmoid(z) = 1 / (1 + exp(-z)); exp -> EUP, reciprocal(approx) -> EUP vrcp
    # (keeps both transcendentals off the VALU slots).
    o_ref[...] = pl.reciprocal(1.0 + jnp.exp(-z), approx=True).astype(o_ref.dtype)


def _round_up(n, m):
    return (n + m - 1) // m * m


def neural_network_forward(x, w, b, *, block_rows=4096):
    """Equivalent of NeuralNetwork.forward: Flatten -> Linear(12, 4) -> Sigmoid.

    x: any shape (B, ...) whose trailing dims flatten to 12.
    w: (12, 4)  -- transposed PyTorch weight.
    b: (4,)
    """
    B = x.shape[0]
    x2 = x.reshape(B, -1).astype(jnp.float32)      # Flatten (glue in plain JAX)
    assert x2.shape[1] == 12, f"expected 12 features, got {x2.shape[1]}"
    w2 = w.astype(jnp.float32)
    b2 = b.reshape(1, 4).astype(jnp.float32)

    # Batch tile: multiple of 8 (sublane) so every block satisfies the (8,128) rule,
    # capped so a double-buffered (TB,12)+(TB,4) f32 block pair stays ~100s of KiB
    # (safe even under v7x's 32 MiB default scoped-VMEM limit).
    TB = min(_round_up(block_rows, 8), _round_up(B, 8))
    B_pad = _round_up(B, TB)
    if B_pad != B:
        # Zero-pad the batch so every grid step sees a full, aligned block;
        # padded rows just produce sigmoid(b) and are sliced off below.
        x2 = jnp.pad(x2, ((0, B_pad - B), (0, 0)))

    out = pl.pallas_call(
        _linear_sigmoid_kernel,
        out_shape=jax.ShapeDtypeStruct((B_pad, 4), jnp.float32),
        grid=(B_pad // TB,),
        in_specs=[
            pl.BlockSpec((TB, 12), lambda i: (i, 0)),   # stream batch tiles
            pl.BlockSpec((12, 4), lambda i: (0, 0)),    # weight stays resident
            pl.BlockSpec((1, 4), lambda i: (0, 0)),     # bias stays resident
        ],
        out_specs=pl.BlockSpec((TB, 4), lambda i: (i, 0)),
        compiler_params=pltpu.CompilerParams(
            dimension_semantics=("parallel",),           # dual-TC sharding on v7x
        ),
    )(x2, w2, b2)
    return out[:B]


if __name__ == "__main__":
    key = jax.random.PRNGKey(0)
    kx, kw, kb = jax.random.split(key, 3)

    # Small input consistent with Flatten -> Linear(12, 4): batch=2, features 3x4 = 12
    x = jax.random.normal(kx, (2, 3, 4), dtype=jnp.float32)

    # Deterministic parameter init (uniform like PyTorch's default Linear init range)
    bound = 1.0 / jnp.sqrt(12.0)
    w = jax.random.uniform(kw, (12, 4), minval=-bound, maxval=bound, dtype=jnp.float32)
    b = jax.random.uniform(kb, (4,), minval=-bound, maxval=bound, dtype=jnp.float32)

    # Small-batch check (single padded block).
    out = jax.block_until_ready(neural_network_forward(x, w, b))
    ref = jax.nn.sigmoid(x.reshape(2, -1) @ w + b)
    assert out.shape == (2, 4)
    # approx reciprocal (EUP vrcp) -> slightly looser tolerance than exact divide
    assert jnp.allclose(out, ref, atol=5e-3), "mismatch vs reference (small batch)"

    # Larger batch to exercise the tiled, multi-step pipelined path (ragged -> padded).
    xb = jax.random.normal(jax.random.PRNGKey(1), (10000, 3, 4), dtype=jnp.float32)
    outb = jax.block_until_ready(neural_network_forward(xb, w, b))
    refb = jax.nn.sigmoid(xb.reshape(10000, -1) @ w + b)
    assert outb.shape == (10000, 4)
    assert jnp.allclose(outb, refb, atol=5e-3), "mismatch vs reference (large batch)"

    print("KERNEL_OK")
</pallas_src>

<mosaic_0001>
module attributes {stable_mosaic.version = 11 : i64} {
  func.func @_linear_sigmoid_kernel(%arg0: i32, %arg1: memref<8x12xf32, #tpu.memory_space<vmem>>, %arg2: memref<12x4xf32, #tpu.memory_space<vmem>>, %arg3: memref<1x4xf32, #tpu.memory_space<vmem>>, %arg4: memref<8x4xf32, #tpu.memory_space<vmem>>) attributes {dimension_semantics = [#tpu.dimension_semantics<parallel>], iteration_bounds = array<i64: 1>, scalar_prefetch = 0 : i64, scratch_operands = 0 : i64, tpu.core_type = #tpu.core_type<tc>, window_params = [{transform_indices = @transform_0, window_bounds = array<i64: 8, 12>}, {pipeline_mode = #tpu.pipeline_mode<synchronous>, transform_indices = @transform_1, window_bounds = array<i64: 12, 4>}, {pipeline_mode = #tpu.pipeline_mode<synchronous>, transform_indices = @transform_2, window_bounds = array<i64: 1, 4>}, {transform_indices = @transform_3, window_bounds = array<i64: 8, 4>}]} {
    %c0 = arith.constant 0 : index
    %c0_0 = arith.constant 0 : index
    %0 = vector.load %arg1[%c0, %c0_0] : memref<8x12xf32, #tpu.memory_space<vmem>>, vector<8x12xf32>
    %c0_1 = arith.constant 0 : index
    %c0_2 = arith.constant 0 : index
    %1 = vector.load %arg2[%c0_1, %c0_2] : memref<12x4xf32, #tpu.memory_space<vmem>>, vector<12x4xf32>
    %c0_3 = arith.constant 0 : index
    %c0_4 = arith.constant 0 : index
    %2 = vector.load %arg3[%c0_3, %c0_4] : memref<1x4xf32, #tpu.memory_space<vmem>>, vector<1x4xf32>
    %cst = arith.constant dense<0.000000e+00> : vector<8x4xf32>
    %3 = tpu.matmul %0, %1, %cst {dimension_numbers = #tpu.dot_dimension_numbers<[1], [0], [0], [1], [0, 0, 1, 1], [], []>} : vector<8x12xf32>, vector<12x4xf32>, vector<8x4xf32> -> vector<8x4xf32>
    %4 = vector.broadcast %2 : vector<1x4xf32> to vector<8x4xf32>
    %5 = arith.addf %3, %4 : vector<8x4xf32>
    %cst_5 = arith.constant 0.000000e+00 : f32
    %6 = vector.broadcast %cst_5 : f32 to vector<8x4xf32>
    %7 = arith.subf %6, %5 : vector<8x4xf32>
    %8 = math.exp %7 : vector<8x4xf32>
    %cst_6 = arith.constant 1.000000e+00 : f32
    %9 = vector.broadcast %cst_6 : f32 to vector<8x4xf32>
    %10 = arith.addf %9, %8 : vector<8x4xf32>
    %11 = tpu.reciprocal %10 {approx = true} : vector<8x4xf32> -> vector<8x4xf32>
    %c0_7 = arith.constant 0 : index
    %c0_8 = arith.constant 0 : index
    %12 = vector.load %arg4[%c0_7, %c0_8] : memref<8x4xf32, #tpu.memory_space<vmem>>, vector<8x4xf32>
    tpu.vector_store %arg4[%c0_7, %c0_8], %11 {strides = array<i32>} : memref<8x4xf32, #tpu.memory_space<vmem>>, vector<8x4xf32>,
    return
  }
  func.func @transform_0(%arg0: i32) -> (i32, i32) {
    %c0_i32 = arith.constant 0 : i32
    %c0_i32_0 = arith.constant 0 : i32
    return %arg0, %c0_i32 : i32, i32
  }
  func.func @transform_1(%arg0: i32) -> (i32, i32) {
    %c0_i32 = arith.constant 0 : i32
    %c0_i32_0 = arith.constant 0 : i32
    %c0_i32_1 = arith.constant 0 : i32
    return %c0_i32, %c0_i32_0 : i32, i32
  }
  func.func @transform_2(%arg0: i32) -> (i32, i32) {
    %c0_i32 = arith.constant 0 : i32
    %c0_i32_0 = arith.constant 0 : i32
    %c0_i32_1 = arith.constant 0 : i32
    return %c0_i32, %c0_i32_0 : i32, i32
  }
  func.func @transform_3(%arg0: i32) -> (i32, i32) {
    %c0_i32 = arith.constant 0 : i32
    %c0_i32_0 = arith.constant 0 : i32
    return %arg0, %c0_i32 : i32, i32
  }
}

</mosaic_0001>

<llo_original>
// kernel: tpu_custom_call.1
$region0: #{tpu_custom_call.1}
  #allocation0 [shape = 'u32[]', space=smem, size = 0x4, offset = 0x4, fixed_abs, tag = 'smem constant byte address 0x4 - core index']
  #allocation1 [shape = 'u32[144,128]{1,0:T(1,128)}', space=vmem, size = 0x12000, scoped, tag = 'internal scratch']
  %s0 = inlined_call_operand.vmem [shape: f32[8,12], index: 0, kind: input, shape index: {}]
  %s1 = inlined_call_operand.vmem [shape: f32[12,4], index: 1, kind: input, shape index: {}]
  %s2 = inlined_call_operand.vmem [shape: f32[1,4], index: 2, kind: input, shape index: {}]
  %s3 = inlined_call_operand.vmem [shape: f32[8,4], index: 3, kind: output, shape index: {}]
  %s4 = sld [smem:[#allocation0]]
  $region22: #{tpu_custom_call.1} parent=0
    _
  %s6 = ssub.s32 1, %s4
  %s7 = scalar_select 0, %s6, %s4
  // Predicated region
  $region2: #{tpu_custom_call.1} parent=0 // pred_check
    _
  $region3: #{tpu_custom_call.1} parent=0 // pred_check_branch
    %9 = sbr.rel (0) target = $region5
  $region4: #{tpu_custom_call.1} parent=0 // pred_region
    _
  $region5: #{tpu_custom_call.1} parent=0 // pred_fallthru
    _
  // Predicated region
  $region6: #{tpu_custom_call.1} parent=0 // pred_check
    _
  $region7: #{tpu_custom_call.1} parent=0 // pred_check_branch
    %11 = sbr.rel (0) target = $region9
  $region8: #{tpu_custom_call.1} parent=0 // pred_region
    _
  $region9: #{tpu_custom_call.1} parent=0 // pred_fallthru
    _
  // Predicated region
  $region10: #{tpu_custom_call.1} parent=0 // pred_check
    _
  $region11: #{tpu_custom_call.1} parent=0 // pred_check_branch
    %13 = sbr.rel (0) target = $region13
  $region12: #{tpu_custom_call.1} parent=0 // pred_region
    _
  $region13: #{tpu_custom_call.1} parent=0 // pred_fallthru
    _
  %v14 = vld [vmem:[%s0] sm:$0xff]
  %v15 = vld [vmem:[%s1] sm:$0xff]
  %v16 = vld [vmem:[%s1 + $0x8] sm:$0xf]
  %v17 = vld [vmem:[%s2] sm:$0x1]
  %v19 = vlaneseq
  %v20 = vshrl.u32 %v19, 7
  %v21 = vsub.s32 0, %v20
  %v22 = vrot.slane %v17, %v21
  %vm24 = vcmask 97280
  %v26 = vsel %vm24, %v14, 0
  %vm28 = vcmask 1043456
  %v30 = vsel %vm28, %v16, 0
  %32 = vmatprep.subr.mxu0 0.0
  %33 = vmatpush1.msra.mxu0 0.0
  %34 = vmatprep.subr.mxu0 0.0
  %35 = vmatpush1.msra.mxu0 0.0
  %36 = vmatprep.subr.mxu0 0.0
  %37 = vmatpush1.msra.mxu0 0.0
  %38 = vmatprep.subr.mxu0 0.0
  %39 = vmatpush1.msra.mxu0 0.0
  %40 = vmatprep.subr.mxu0 0.0
  %41 = vmatpush1.msra.mxu0 0.0
  %42 = vmatprep.subr.mxu0 0.0
  %43 = vmatpush1.msra.mxu0 0.0
  %44 = vmatprep.subr.mxu0 0.0
  %45 = vmatpush1.msra.mxu0 0.0
  %46 = vmatprep.subr.mxu0 0.0
  %47 = vmatpush1.msra.mxu0 0.0
  %48 = vmatprep.subr.mxu0 0.0
  %49 = vmatpush1.msra.mxu0 0.0
  %50 = vmatprep.subr.mxu0 0.0
  %51 = vmatpush1.msra.mxu0 0.0
  %52 = vmatprep.subr.mxu0 0.0
  %53 = vmatpush1.msra.mxu0 0.0
  %54 = vmatprep.subr.mxu0 0.0
  %55 = vmatpush1.msra.mxu0 0.0
  %56 = vmatprep.subr.mxu0 0.0
  %57 = vmatpush1.msra.mxu0 0.0
  %58 = vmatprep.subr.mxu0 0.0
  %59 = vmatpush1.msra.mxu0 0.0
  %60 = vmatprep.subr.mxu0 0.0
  %61 = vmatpush1.msra.mxu0 %v30
  %62 = vmatprep.subr.mxu0 0.0
  %63 = vmatpush1.msra.mxu0 %v15
  %64 = vmatprep.subr.mxu0 0.0
  %65 = vmatpush2.msra.mxu0 0.0
  %66 = vmatprep.subr.mxu0 0.0
  %67 = vmatpush2.msra.mxu0 0.0
  %68 = vmatprep.subr.mxu0 0.0
  %69 = vmatpush2.msra.mxu0 0.0
  %70 = vmatprep.subr.mxu0 0.0
  %71 = vmatpush2.msra.mxu0 0.0
  %72 = vmatprep.subr.mxu0 0.0
  %73 = vmatpush2.msra.mxu0 0.0
  %74 = vmatprep.subr.mxu0 0.0
  %75 = vmatpush2.msra.mxu0 0.0
  %76 = vmatprep.subr.mxu0 0.0
  %77 = vmatpush2.msra.mxu0 0.0
  %78 = vmatprep.subr.mxu0 0.0
  %79 = vmatpush2.msra.mxu0 0.0
  %80 = vmatprep.subr.mxu0 0.0
  %81 = vmatpush2.msra.mxu0 0.0
  %82 = vmatprep.subr.mxu0 0.0
  %83 = vmatpush2.msra.mxu0 0.0
  %84 = vmatprep.subr.mxu0 0.0
  %85 = vmatpush2.msra.mxu0 0.0
  %86 = vmatprep.subr.mxu0 0.0
  %87 = vmatpush2.msra.mxu0 0.0
  %88 = vmatprep.subr.mxu0 0.0
  %89 = vmatpush2.msra.mxu0 0.0
  %90 = vmatprep.subr.mxu0 0.0
  %91 = vmatpush2.msra.mxu0 0.0
  %92 = vmatprep.subr.mxu0 0.0
  %93 = vmatpush2.msra.mxu0 0.0
  %94 = vmatprep.subr.mxu0 0.0
  %95 = vmatpush2.msra.mxu0 0.0
  %96 = vmatprep.mubr.f32.mxu0 0.0
  %97 = vmatmul.mubr.f32.gmra.mxu0 %v26
  %v98 = vpop.f32.mrf.mxu0
  %v99 = vadd.f32 %v22, %v98
  %v100 = vpop.f32.mrf.mxu0
  %101 = vdwg.mxu0
  %v102 = vsub.f32 0.0, %v99
  %v103 = vmul.f32 %v102, 1.442695
  %v104 = vpow.pop %v103
  %v105 = vadd.f32 %v104, 1.0
  %v106 = vrcp.pop %v105
  %vm107 = vcmask 31744
  %108 = vst.msk [vmem:[%s3] sm:$0xff] %vm107, %v106
  // Predicated region
  $region14: #{tpu_custom_call.1} parent=0 // pred_check
    _
  $region15: #{tpu_custom_call.1} parent=0 // pred_check_branch
    %110 = sbr.rel (0) target = $region17
  $region16: #{tpu_custom_call.1} parent=0 // pred_region
    _
  $region17: #{tpu_custom_call.1} parent=0 // pred_fallthru
    _
  // Predicated region
  $region18: #{tpu_custom_call.1} parent=0 // pred_check
    _
  $region19: #{tpu_custom_call.1} parent=0 // pred_check_branch
    %112 = sbr.rel (0) target = $region21
  $region20: #{tpu_custom_call.1} parent=0 // pred_region
    _
  $region21: #{tpu_custom_call.1} parent=0 // pred_fallthru
    _

</llo_original>
